<compile_context>
chip_gen: v7x
topology: tpu7x:2x2x1
jax: 0.10.0
libtpu: 0.0.40
codegen_flags: <defaults>
</compile_context>

<pallas_src>
import jax
import jax.numpy as jnp
from jax.experimental import pallas as pl
from jax.experimental.pallas import tpu as pltpu


def _round_up(a, b):
    return (a + b - 1) // b * b


# ---------------- Pallas kernel (whole forward, fused) ----------------

def _fused_conv_conv_gelu_kernel(a_ref, bdg_ref, b1_ref, w2_ref, b2_ref, o_ref):
    # a:   (TM, KH2*KW2*K1)              composite patches (conv2-patch rows, conv1-K minor)
    # bdg: (KH2*KW2*K1, KH2*KW2*C1out)   block-diagonal conv1 weight matrix
    # b1:  (1, KH2*KW2*C1out)            conv1 bias tiled per conv2 kernel position
    # w2:  (KH2*KW2*C1out, C2out)        conv2 weights, K ordered (kh2, kw2, ci)
    # b2:  (1, C2out)
    p2 = jnp.dot(a_ref[...], bdg_ref[...], preferred_element_type=jnp.float32) + b1_ref[...]
    v2 = jnp.dot(p2, w2_ref[...], preferred_element_type=jnp.float32) + b2_ref[...]
    # exact elementwise chain from the PyTorch forward (tanh-approx GELU)
    v3 = v2 * 0.5
    v5 = (v2 * v2) * v2
    v7 = v2 + v5 * 0.044715
    v9 = jnp.tanh(v7 * 0.7978845608028654)
    o_ref[...] = v3 * (v9 + 1.0)


# ---------------- wrapper: reshape/slice-only layout glue + pallas_call ----------------

def model_forward(x, params):
    """x: (N, 5, H, W) float32 NCHW. Returns (N, 2, OH2, OW2) NCHW."""
    w1, b1, w2, b2 = params          # w1: (2,5,4,4), b1: (2,), w2: (2,2,4,4), b2: (2,)
    N, C, H, W = x.shape
    KH1 = KW1 = 4
    S1 = 4
    KH2 = KW2 = 4
    S2 = 8

    OH1 = (H - KH1) // S1 + 1
    OW1 = (W - KW1) // S1 + 1
    OH2 = (OH1 - KH2) // S2 + 1
    OW2 = (OW1 - KW2) // S2 + 1

    C1out = w1.shape[0]
    C2out = w2.shape[0]
    K1 = C * KH1 * KW1               # 80
    KK2 = KH2 * KW2                  # 16
    KA = KK2 * K1                    # 1280
    KB = KK2 * C1out                 # 32

    # ---- composite im2col: pure reshape + static slicing (no gathers) ----
    # conv1 stride == kernel -> non-overlapping 4x4 blocks (space-to-depth reshape).
    x = x[:, :, :OH1 * S1, :OW1 * S1]
    xr = x.reshape(N, C, OH1, KH1, OW1, KW1)          # (n, ci, r, kh1, c, kw1)
    # conv2 (k=4, s=8) only reads conv1-output rows/cols [oh*8 : oh*8+4] -> static slices.
    xr = jnp.stack([xr[:, :, oh * S2: oh * S2 + KH2] for oh in range(OH2)], axis=2)
    # (n, ci, oh2, kh2, kh1, c, kw1)
    xr = jnp.stack([xr[:, :, :, :, :, ow * S2: ow * S2 + KW2] for ow in range(OW2)], axis=5)
    # (n, ci, oh2, kh2, kh1, ow2, kw2, kw1)
    q = jnp.transpose(xr, (0, 2, 5, 3, 6, 1, 4, 7))   # (n, oh2, ow2, kh2, kw2, ci, kh1, kw1)
    M2 = N * OH2 * OW2
    A = q.reshape(M2, KA).astype(jnp.float32)         # rows = conv2 patches, cols = (khkw2, k1)

    # ---- weights in matmul form ----
    w1m = w1.reshape(C1out, K1).astype(jnp.float32)   # K1 order (ci, kh1, kw1)
    # block-diagonal conv1 weight: Bdg[p*K1 + k, p*C1out + c] = w1m[c, k]
    eye = jnp.eye(KK2, dtype=jnp.float32)
    Bdg = jnp.einsum('pq,ck->pkqc', eye, w1m).reshape(KA, KB)
    b1t = jnp.tile(b1.astype(jnp.float32), KK2).reshape(1, KB)
    # conv2 weights with K ordered (kh2, kw2, ci) to match P2's column ordering
    w2m = jnp.transpose(w2, (2, 3, 1, 0)).reshape(KB, C2out).astype(jnp.float32)
    b2r = b2.reshape(1, C2out).astype(jnp.float32)

    # ---- tiling over patch rows (megacore / VMEM safe if shapes scale) ----
    TM = min(256, _round_up(M2, 8))
    M2_pad = _round_up(M2, TM)
    if M2_pad != M2:
        A = jnp.pad(A, ((0, M2_pad - M2), (0, 0)))
    grid = (M2_pad // TM,)

    flops = 2 * M2_pad * KA * KB + 2 * M2_pad * KB * C2out + 10 * M2_pad * C2out
    cost = pl.CostEstimate(
        flops=flops,
        transcendentals=M2_pad * C2out,
        bytes_accessed=4 * (M2_pad * KA + KA * KB + KB + KB * C2out + C2out + M2_pad * C2out),
    )

    out_flat = pl.pallas_call(
        _fused_conv_conv_gelu_kernel,
        out_shape=jax.ShapeDtypeStruct((M2_pad, C2out), jnp.float32),
        grid_spec=pltpu.PrefetchScalarGridSpec(
            num_scalar_prefetch=0,
            grid=grid,
            in_specs=[
                pl.BlockSpec((TM, KA), lambda i: (i, 0)),        # A: tiled over rows
                pl.BlockSpec((KA, KB), lambda i: (0, 0)),        # Bdg: resident
                pl.BlockSpec((1, KB), lambda i: (0, 0)),         # b1 tiled
                pl.BlockSpec((KB, C2out), lambda i: (0, 0)),     # W2
                pl.BlockSpec((1, C2out), lambda i: (0, 0)),      # b2
            ],
            out_specs=pl.BlockSpec((TM, C2out), lambda i: (i, 0)),
        ),
        compiler_params=pltpu.CompilerParams(dimension_semantics=("parallel",)),
        cost_estimate=cost,
    )(A, Bdg, b1t, w2m, b2r)

    # single, tiny final layout fixup to NCHW
    out = out_flat[:M2].reshape(N, OH2, OW2, C2out).transpose(0, 3, 1, 2)
    return out


# ---------------- pure-JAX reference (for correctness check) ----------------

def _reference_forward(x, params):
    w1, b1, w2, b2 = params
    dn = ('NCHW', 'OIHW', 'NCHW')
    v1 = jax.lax.conv_general_dilated(
        x, w1, window_strides=(4, 4), padding='VALID', dimension_numbers=dn,
        precision=jax.lax.Precision.HIGHEST) + b1.reshape(1, -1, 1, 1)
    v2 = jax.lax.conv_general_dilated(
        v1, w2, window_strides=(8, 8), padding='VALID', dimension_numbers=dn,
        precision=jax.lax.Precision.HIGHEST) + b2.reshape(1, -1, 1, 1)
    v3 = v2 * 0.5
    v7 = v2 + (v2 * v2) * v2 * 0.044715
    return v3 * (jnp.tanh(v7 * 0.7978845608028654) + 1.0)


def init_params(key):
    k1, k2, k3, k4 = jax.random.split(key, 4)
    fan1 = 5 * 4 * 4
    fan2 = 2 * 4 * 4
    bound1 = 1.0 / jnp.sqrt(fan1)
    bound2 = 1.0 / jnp.sqrt(fan2)
    w1 = jax.random.uniform(k1, (2, 5, 4, 4), jnp.float32, -bound1, bound1)
    b1 = jax.random.uniform(k2, (2,), jnp.float32, -bound1, bound1)
    w2 = jax.random.uniform(k3, (2, 2, 4, 4), jnp.float32, -bound2, bound2)
    b2 = jax.random.uniform(k4, (2,), jnp.float32, -bound2, bound2)
    return (w1, b1, w2, b2)


if __name__ == "__main__":
    key = jax.random.PRNGKey(0)
    pkey, xkey = jax.random.split(key)
    params = init_params(pkey)

    # N=2, C=5, H=W=64 -> conv1 out (2,2,16,16) -> conv2+GELU out (2,2,2,2)
    x = jax.random.normal(xkey, (2, 5, 64, 64), jnp.float32)

    out = jax.jit(model_forward)(x, params)
    out = jax.block_until_ready(out)
    assert out.shape == (2, 2, 2, 2), out.shape
    assert bool(jnp.all(jnp.isfinite(out)))

    ref = _reference_forward(x, params)
    assert bool(jnp.allclose(out, ref, atol=2e-3, rtol=2e-3)), float(jnp.max(jnp.abs(out - ref)))
    print("KERNEL_OK")
</pallas_src>

<mosaic_0001>
module attributes {stable_mosaic.version = 11 : i64} {
  func.func @_fused_conv_conv_gelu_kernel(%arg0: i32, %arg1: memref<8x1280xf32, #tpu.memory_space<vmem>>, %arg2: memref<1280x32xf32, #tpu.memory_space<vmem>>, %arg3: memref<1x32xf32, #tpu.memory_space<vmem>>, %arg4: memref<32x2xf32, #tpu.memory_space<vmem>>, %arg5: memref<1x2xf32, #tpu.memory_space<vmem>>, %arg6: memref<8x2xf32, #tpu.memory_space<vmem>>) attributes {dimension_semantics = [#tpu.dimension_semantics<parallel>], iteration_bounds = array<i64: 1>, scalar_prefetch = 0 : i64, scratch_operands = 0 : i64, tpu.core_type = #tpu.core_type<tc>, window_params = [{transform_indices = @transform_0, window_bounds = array<i64: 8, 1280>}, {pipeline_mode = #tpu.pipeline_mode<synchronous>, transform_indices = @transform_1, window_bounds = array<i64: 1280, 32>}, {pipeline_mode = #tpu.pipeline_mode<synchronous>, transform_indices = @transform_2, window_bounds = array<i64: 1, 32>}, {pipeline_mode = #tpu.pipeline_mode<synchronous>, transform_indices = @transform_3, window_bounds = array<i64: 32, 2>}, {pipeline_mode = #tpu.pipeline_mode<synchronous>, transform_indices = @transform_4, window_bounds = array<i64: 1, 2>}, {transform_indices = @transform_5, window_bounds = array<i64: 8, 2>}]} {
    %c0 = arith.constant 0 : index
    %c0_0 = arith.constant 0 : index
    %0 = vector.load %arg1[%c0, %c0_0] : memref<8x1280xf32, #tpu.memory_space<vmem>>, vector<8x1280xf32>
    %c0_1 = arith.constant 0 : index
    %c0_2 = arith.constant 0 : index
    %1 = vector.load %arg2[%c0_1, %c0_2] : memref<1280x32xf32, #tpu.memory_space<vmem>>, vector<1280x32xf32>
    %cst = arith.constant dense<0.000000e+00> : vector<8x32xf32>
    %2 = tpu.matmul %0, %1, %cst {dimension_numbers = #tpu.dot_dimension_numbers<[1], [0], [0], [1], [0, 0, 1, 1], [], []>} : vector<8x1280xf32>, vector<1280x32xf32>, vector<8x32xf32> -> vector<8x32xf32>
    %c0_3 = arith.constant 0 : index
    %c0_4 = arith.constant 0 : index
    %3 = vector.load %arg3[%c0_3, %c0_4] : memref<1x32xf32, #tpu.memory_space<vmem>>, vector<1x32xf32>
    %4 = vector.broadcast %3 : vector<1x32xf32> to vector<8x32xf32>
    %5 = arith.addf %2, %4 : vector<8x32xf32>
    %c0_5 = arith.constant 0 : index
    %c0_6 = arith.constant 0 : index
    %6 = vector.load %arg4[%c0_5, %c0_6] : memref<32x2xf32, #tpu.memory_space<vmem>>, vector<32x2xf32>
    %cst_7 = arith.constant dense<0.000000e+00> : vector<8x2xf32>
    %7 = tpu.matmul %5, %6, %cst_7 {dimension_numbers = #tpu.dot_dimension_numbers<[1], [0], [0], [1], [0, 0, 1, 1], [], []>} : vector<8x32xf32>, vector<32x2xf32>, vector<8x2xf32> -> vector<8x2xf32>
    %c0_8 = arith.constant 0 : index
    %c0_9 = arith.constant 0 : index
    %8 = vector.load %arg5[%c0_8, %c0_9] : memref<1x2xf32, #tpu.memory_space<vmem>>, vector<1x2xf32>
    %9 = vector.broadcast %8 : vector<1x2xf32> to vector<8x2xf32>
    %10 = arith.addf %7, %9 : vector<8x2xf32>
    %cst_10 = arith.constant 5.000000e-01 : f32
    %11 = vector.broadcast %cst_10 : f32 to vector<8x2xf32>
    %12 = arith.mulf %10, %11 : vector<8x2xf32>
    %13 = arith.mulf %10, %10 : vector<8x2xf32>
    %14 = arith.mulf %13, %10 : vector<8x2xf32>
    %cst_11 = arith.constant 4.471500e-02 : f32
    %15 = vector.broadcast %cst_11 : f32 to vector<8x2xf32>
    %16 = arith.mulf %14, %15 : vector<8x2xf32>
    %17 = arith.addf %10, %16 : vector<8x2xf32>
    %cst_12 = arith.constant 0.797884583 : f32
    %18 = vector.broadcast %cst_12 : f32 to vector<8x2xf32>
    %19 = arith.mulf %17, %18 : vector<8x2xf32>
    %20 = math.tanh %19 : vector<8x2xf32>
    %cst_13 = arith.constant 1.000000e+00 : f32
    %21 = vector.broadcast %cst_13 : f32 to vector<8x2xf32>
    %22 = arith.addf %20, %21 : vector<8x2xf32>
    %23 = arith.mulf %12, %22 : vector<8x2xf32>
    %c0_14 = arith.constant 0 : index
    %c0_15 = arith.constant 0 : index
    %24 = vector.load %arg6[%c0_14, %c0_15] : memref<8x2xf32, #tpu.memory_space<vmem>>, vector<8x2xf32>
    tpu.vector_store %arg6[%c0_14, %c0_15], %23 {strides = array<i32>} : memref<8x2xf32, #tpu.memory_space<vmem>>, vector<8x2xf32>,
    return
  }
  func.func @transform_0(%arg0: i32) -> (i32, i32) {
    %c0_i32 = arith.constant 0 : i32
    %c0_i32_0 = arith.constant 0 : i32
    return %arg0, %c0_i32 : i32, i32
  }
  func.func @transform_1(%arg0: i32) -> (i32, i32) {
    %c0_i32 = arith.constant 0 : i32
    %c0_i32_0 = arith.constant 0 : i32
    %c0_i32_1 = arith.constant 0 : i32
    return %c0_i32, %c0_i32_0 : i32, i32
  }
  func.func @transform_2(%arg0: i32) -> (i32, i32) {
    %c0_i32 = arith.constant 0 : i32
    %c0_i32_0 = arith.constant 0 : i32
    %c0_i32_1 = arith.constant 0 : i32
    return %c0_i32, %c0_i32_0 : i32, i32
  }
  func.func @transform_3(%arg0: i32) -> (i32, i32) {
    %c0_i32 = arith.constant 0 : i32
    %c0_i32_0 = arith.constant 0 : i32
    %c0_i32_1 = arith.constant 0 : i32
    return %c0_i32, %c0_i32_0 : i32, i32
  }
  func.func @transform_4(%arg0: i32) -> (i32, i32) {
    %c0_i32 = arith.constant 0 : i32
    %c0_i32_0 = arith.constant 0 : i32
    %c0_i32_1 = arith.constant 0 : i32
    return %c0_i32, %c0_i32_0 : i32, i32
  }
  func.func @transform_5(%arg0: i32) -> (i32, i32) {
    %c0_i32 = arith.constant 0 : i32
    %c0_i32_0 = arith.constant 0 : i32
    return %arg0, %c0_i32 : i32, i32
  }
}

</mosaic_0001>

<llo_original>
// kernel: tile.8
$region0: #{tile.8}
  #allocation0 [shape = 's32[1]{0}', space=sflag, size = 0x4, scoped, tag = 'scoped memory for tile.8']
  %s0 = inlined_call_operand.vmem [shape: f32[2], index: 0, kind: input, shape index: {}]
  %s1 = inlined_call_operand.vmem [shape: f32[16,2], index: 1, kind: output, shape index: {}]
  // Predicated region
  $region2: #{tile.8} parent=0 // pred_check
    _
  $region3: #{tile.8} parent=0 // pred_check_branch
    %3 = sbr.rel (0) target = $region5
  $region4: #{tile.8} parent=0 // pred_region
    _
  $region5: #{tile.8} parent=0 // pred_fallthru
    _
  %v4 = vld [vmem:[%s0] ss:$0 sm:$0xff]
  %5 = vst [vmem:[%s1] sm:$0xff] %v4
  %s6 = scalar_lea.vmem %s1, 8
  %7 = vst [vmem:[%s6] sm:$0xff] %v4

// kernel: tile.9
$region0: #{tile.9}
  %s0 = inlined_call_operand.vmem [shape: f32[16,2], index: 0, kind: input, shape index: {}]
  %s1 = inlined_call_operand.vmem [shape: f32[1,32], index: 1, kind: output, shape index: {}]
  $region1: #{tile.9} parent=0
    #allocation0 [shape = 'u8[4096]{0}', space=vmem, size = 0x1000, scoped, tag = 'scoped mem for output reshape']
    %v2 = vld [vmem:[%s0] sm:$0x1]
    %vm3 = vcmask 15360
    %4 = vst.msk [vmem:[#allocation0] sm:$0x1] %vm3, %v2
    %s5 = scalar_lea.vmem %s0, 15
    %v6 = vld [vmem:[%s5] sm:$0x1]
    %7 = vrot.lane.b32.xlu0 %v6, 30
    %v8 = vpop.permute.xlu0 %7
    %vm9 = vcmask 261360
    %10 = vst.msk [vmem:[#allocation0] sm:$0x1] %vm9, %v8
    %s11 = scalar_lea.vmem %s0, 14
    %v12 = vld [vmem:[%s11] sm:$0x1]
    %13 = vrot.lane.b32.xlu0 %v12, 28
    %v14 = vpop.permute.xlu0 %13
    %vm15 = vcmask 244960
    %16 = vst.msk [vmem:[#allocation0] sm:$0x1] %vm15, %v14
    %s17 = scalar_lea.vmem %s0, 13
    %v18 = vld [vmem:[%s17] sm:$0x1]
    %19 = vrot.lane.b32.xlu0 %v18, 26
    %v20 = vpop.permute.xlu0 %19
    %vm21 = vcmask 228560
    %22 = vst.msk [vmem:[#allocation0] sm:$0x1] %vm21, %v20
    %s23 = scalar_lea.vmem %s0, 12
    %v24 = vld [vmem:[%s23] sm:$0x1]
    %25 = vrot.lane.b32.xlu0 %v24, 24
    %v26 = vpop.permute.xlu0 %25
    %vm27 = vcmask 212160
    %28 = vst.msk [vmem:[#allocation0] sm:$0x1] %vm27, %v26
    %s29 = scalar_lea.vmem %s0, 11
    %v30 = vld [vmem:[%s29] sm:$0x1]
    %31 = vrot.lane.b32.xlu0 %v30, 22
    %v32 = vpop.permute.xlu0 %31
    %vm33 = vcmask 195760
    %34 = vst.msk [vmem:[#allocation0] sm:$0x1] %vm33, %v32
    %s35 = scalar_lea.vmem %s0, 10
    %v36 = vld [vmem:[%s35] sm:$0x1]
    %37 = vrot.lane.b32.xlu0 %v36, 20
    %v38 = vpop.permute.xlu0 %37
    %vm39 = vcmask 179360
    %40 = vst.msk [vmem:[#allocation0] sm:$0x1] %vm39, %v38
    %s41 = scalar_lea.vmem %s0, 9
    %v42 = vld [vmem:[%s41] sm:$0x1]
    %43 = vrot.lane.b32.xlu0 %v42, 18
    %v44 = vpop.permute.xlu0 %43
    %vm45 = vcmask 162960
    %46 = vst.msk [vmem:[#allocation0] sm:$0x1] %vm45, %v44
    %s47 = scalar_lea.vmem %s0, 8
    %v48 = vld [vmem:[%s47] sm:$0x1]
    %49 = vrot.lane.b32.xlu0 %v48, 16
    %v50 = vpop.permute.xlu0 %49
    %vm51 = vcmask 146560
    %52 = vst.msk [vmem:[#allocation0] sm:$0x1] %vm51, %v50
    %s53 = scalar_lea.vmem %s0, 7
    %v54 = vld [vmem:[%s53] sm:$0x1]
    %55 = vrot.lane.b32.xlu0 %v54, 14
    %v56 = vpop.permute.xlu0 %55
    %vm57 = vcmask 130160
    %58 = vst.msk [vmem:[#allocation0] sm:$0x1] %vm57, %v56
    %s59 = scalar_lea.vmem %s0, 6
    %v60 = vld [vmem:[%s59] sm:$0x1]
    %61 = vrot.lane.b32.xlu0 %v60, 12
    %v62 = vpop.permute.xlu0 %61
    %vm63 = vcmask 113760
    %64 = vst.msk [vmem:[#allocation0] sm:$0x1] %vm63, %v62
    %s65 = scalar_lea.vmem %s0, 5
    %v66 = vld [vmem:[%s65] sm:$0x1]
    %67 = vrot.lane.b32.xlu0 %v66, 10
    %v68 = vpop.permute.xlu0 %67
    %vm69 = vcmask 97360
    %70 = vst.msk [vmem:[#allocation0] sm:$0x1] %vm69, %v68
    %s71 = scalar_lea.vmem %s0, 4
    %v72 = vld [vmem:[%s71] sm:$0x1]
    %73 = vrot.lane.b32.xlu0 %v72, 8
    %v74 = vpop.permute.xlu0 %73
    %vm75 = vcmask 80960
    %76 = vst.msk [vmem:[#allocation0] sm:$0x1] %vm75, %v74
    %s77 = scalar_lea.vmem %s0, 3
    %v78 = vld [vmem:[%s77] sm:$0x1]
    %79 = vrot.lane.b32.xlu0 %v78, 6
    %v80 = vpop.permute.xlu0 %79
    %vm81 = vcmask 64560
    %82 = vst.msk [vmem:[#allocation0] sm:$0x1] %vm81, %v80
    %s83 = scalar_lea.vmem %s0, 2
    %v84 = vld [vmem:[%s83] sm:$0x1]
    %85 = vrot.lane.b32.xlu0 %v84, 4
    %v86 = vpop.permute.xlu0 %85
    %vm87 = vcmask 48160
    %88 = vst.msk [vmem:[#allocation0] sm:$0x1] %vm87, %v86
    %s89 = scalar_lea.vmem %s0, 1
    %v90 = vld [vmem:[%s89] sm:$0x1]
    %91 = vrot.lane.b32.xlu0 %v90, 2
    %v92 = vpop.permute.xlu0 %91
    %vm93 = vcmask 31760
    %94 = vst.msk [vmem:[#allocation0] sm:$0x1] %vm93, %v92
    %s96 = sshllo.u32 0, 1
    %v98 = vld [vmem:[#allocation0] sm:%s96]
    %s99 = sshllo.u32 0, 1
    %100 = vst [vmem:[%s1] sm:%s99] %v98

// kernel: model_forward.1
$region0: #{model_forward.1}
  #allocation0 [shape = 'u32[]', space=smem, size = 0x4, offset = 0x4, fixed_abs, tag = 'smem constant byte address 0x4 - core index']
  #allocation1 [shape = 'u32[144,128]{1,0:T(1,128)}', space=vmem, size = 0x12000, scoped, tag = 'internal scratch']
  %s0 = inlined_call_operand.vmem [shape: f32[8,1280], index: 0, kind: input, shape index: {}]
  %s1 = inlined_call_operand.vmem [shape: f32[1280,32], index: 1, kind: input, shape index: {}]
  %s2 = inlined_call_operand.vmem [shape: f32[1,32], index: 2, kind: input, shape index: {}]
  %s3 = inlined_call_operand.vmem [shape: f32[32,2], index: 3, kind: input, shape index: {}]
  %s4 = inlined_call_operand.vmem [shape: f32[1,2], index: 4, kind: input, shape index: {}]
  %s5 = inlined_call_operand.vmem [shape: f32[8,2], index: 5, kind: output, shape index: {}]
  %s6 = sld [smem:[#allocation0]]
  $region30: #{model_forward.1} parent=0
    _
  %s8 = ssub.s32 1, %s6
  %s9 = scalar_select 0, %s8, %s6
  // Predicated region
  $region2: #{model_forward.1} parent=0 // pred_check
    _
  $region3: #{model_forward.1} parent=0 // pred_check_branch
    %11 = sbr.rel (0) target = $region5
  $region4: #{model_forward.1} parent=0 // pred_region
    _
  $region5: #{model_forward.1} parent=0 // pred_fallthru
    _
  // Predicated region
  $region6: #{model_forward.1} parent=0 // pred_check
    _
  $region7: #{model_forward.1} parent=0 // pred_check_branch
    %13 = sbr.rel (0) target = $region9
  $region8: #{model_forward.1} parent=0 // pred_region
    _
  $region9: #{model_forward.1} parent=0 // pred_fallthru
    _
  // Predicated region
  $region10: #{model_forward.1} parent=0 // pred_check
    _
  $region11: #{model_forward.1} parent=0 // pred_check_branch
    %15 = sbr.rel (0) target = $region13
  $region12: #{model_forward.1} parent=0 // pred_region
    _
  $region13: #{model_forward.1} parent=0 // pred_fallthru
    _
  // Predicated region
  $region14: #{model_forward.1} parent=0 // pred_check
    _
  $region15: #{model_forward.1} parent=0 // pred_check_branch
    %17 = sbr.rel (0) target = $region17
  $region16: #{model_forward.1} parent=0 // pred_region
    _
  $region17: #{model_forward.1} parent=0 // pred_fallthru
    _
  // Predicated region
  $region18: #{model_forward.1} parent=0 // pred_check
    _
  $region19: #{model_forward.1} parent=0 // pred_check_branch
    %19 = sbr.rel (0) target = $region21
  $region20: #{model_forward.1} parent=0 // pred_region
    _
  $region21: #{model_forward.1} parent=0 // pred_fallthru
    _
  %v20 = vld [vmem:[%s0] sm:$0xff]
  %v21 = vld [vmem:[%s0 + $0x8] sm:$0xff]
  %v22 = vld [vmem:[%s0 + $0x10] sm:$0xff]
  %v23 = vld [vmem:[%s0 + $0x18] sm:$0xff]
  %v24 = vld [vmem:[%s0 + $0x20] sm:$0xff]
  %v25 = vld [vmem:[%s0 + $0x28] sm:$0xff]
  %v26 = vld [vmem:[%s0 + $0x30] sm:$0xff]
  %v27 = vld [vmem:[%s0 + $0x38] sm:$0xff]
  %v28 = vld [vmem:[%s0 + $0x40] sm:$0xff]
  %v29 = vld [vmem:[%s0 + $0x48] sm:$0xff]
  %v30 = vld [vmem:[%s1] sm:$0xff]
  %v31 = vld [vmem:[%s1 + $0x8] sm:$0xff]
  %v32 = vld [vmem:[%s1 + $0x10] sm:$0xff]
  %v33 = vld [vmem:[%s1 + $0x18] sm:$0xff]
  %v34 = vld [vmem:[%s1 + $0x20] sm:$0xff]
  %v35 = vld [vmem:[%s1 + $0x28] sm:$0xff]
  %v36 = vld [vmem:[%s1 + $0x30] sm:$0xff]
  %v37 = vld [vmem:[%s1 + $0x38] sm:$0xff]
  %v38 = vld [vmem:[%s1 + $0x40] sm:$0xff]
  %v39 = vld [vmem:[%s1 + $0x48] sm:$0xff]
  %v40 = vld [vmem:[%s1 + $0x50] sm:$0xff]
  %v41 = vld [vmem:[%s1 + $0x58] sm:$0xff]
  %v42 = vld [vmem:[%s1 + $0x60] sm:$0xff]
  %v43 = vld [vmem:[%s1 + $0x68] sm:$0xff]
  %v44 = vld [vmem:[%s1 + $0x70] sm:$0xff]
  %v45 = vld [vmem:[%s1 + $0x78] sm:$0xff]
  %v46 = vld [vmem:[%s1 + $0x80] sm:$0xff]
  %v47 = vld [vmem:[%s1 + $0x88] sm:$0xff]
  %v48 = vld [vmem:[%s1 + $0x90] sm:$0xff]
  %v49 = vld [vmem:[%s1 + $0x98] sm:$0xff]
  %v50 = vld [vmem:[%s1 + $0xa0] sm:$0xff]
  %v51 = vld [vmem:[%s1 + $0xa8] sm:$0xff]
  %v52 = vld [vmem:[%s1 + $0xb0] sm:$0xff]
  %v53 = vld [vmem:[%s1 + $0xb8] sm:$0xff]
  %v54 = vld [vmem:[%s1 + $0xc0] sm:$0xff]
  %v55 = vld [vmem:[%s1 + $0xc8] sm:$0xff]
  %v56 = vld [vmem:[%s1 + $0xd0] sm:$0xff]
  %v57 = vld [vmem:[%s1 + $0xd8] sm:$0xff]
  %v58 = vld [vmem:[%s1 + $0xe0] sm:$0xff]
  %v59 = vld [vmem:[%s1 + $0xe8] sm:$0xff]
  %v60 = vld [vmem:[%s1 + $0xf0] sm:$0xff]
  %v61 = vld [vmem:[%s1 + $0xf8] sm:$0xff]
  %v62 = vld [vmem:[%s1 + $0x100] sm:$0xff]
  %v63 = vld [vmem:[%s1 + $0x108] sm:$0xff]
  %v64 = vld [vmem:[%s1 + $0x110] sm:$0xff]
  %v65 = vld [vmem:[%s1 + $0x118] sm:$0xff]
  %v66 = vld [vmem:[%s1 + $0x120] sm:$0xff]
  %v67 = vld [vmem:[%s1 + $0x128] sm:$0xff]
  %v68 = vld [vmem:[%s1 + $0x130] sm:$0xff]
  %v69 = vld [vmem:[%s1 + $0x138] sm:$0xff]
  %v70 = vld [vmem:[%s1 + $0x140] sm:$0xff]
  %v71 = vld [vmem:[%s1 + $0x148] sm:$0xff]
  %v72 = vld [vmem:[%s1 + $0x150] sm:$0xff]
  %v73 = vld [vmem:[%s1 + $0x158] sm:$0xff]
  %v74 = vld [vmem:[%s1 + $0x160] sm:$0xff]
  %v75 = vld [vmem:[%s1 + $0x168] sm:$0xff]
  %v76 = vld [vmem:[%s1 + $0x170] sm:$0xff]
  %v77 = vld [vmem:[%s1 + $0x178] sm:$0xff]
  %v78 = vld [vmem:[%s1 + $0x180] sm:$0xff]
  %v79 = vld [vmem:[%s1 + $0x188] sm:$0xff]
  %v80 = vld [vmem:[%s1 + $0x190] sm:$0xff]
  %v81 = vld [vmem:[%s1 + $0x198] sm:$0xff]
  %v82 = vld [vmem:[%s1 + $0x1a0] sm:$0xff]
  %v83 = vld [vmem:[%s1 + $0x1a8] sm:$0xff]
  %v84 = vld [vmem:[%s1 + $0x1b0] sm:$0xff]
  %v85 = vld [vmem:[%s1 + $0x1b8] sm:$0xff]
  %v86 = vld [vmem:[%s1 + $0x1c0] sm:$0xff]
  %v87 = vld [vmem:[%s1 + $0x1c8] sm:$0xff]
  %v88 = vld [vmem:[%s1 + $0x1d0] sm:$0xff]
  %v89 = vld [vmem:[%s1 + $0x1d8] sm:$0xff]
  %v90 = vld [vmem:[%s1 + $0x1e0] sm:$0xff]
  %v91 = vld [vmem:[%s1 + $0x1e8] sm:$0xff]
  %v92 = vld [vmem:[%s1 + $0x1f0] sm:$0xff]
  %v93 = vld [vmem:[%s1 + $0x1f8] sm:$0xff]
  %v94 = vld [vmem:[%s1 + $0x200] sm:$0xff]
  %v95 = vld [vmem:[%s1 + $0x208] sm:$0xff]
  %v96 = vld [vmem:[%s1 + $0x210] sm:$0xff]
  %v97 = vld [vmem:[%s1 + $0x218] sm:$0xff]
  %v98 = vld [vmem:[%s1 + $0x220] sm:$0xff]
  %v99 = vld [vmem:[%s1 + $0x228] sm:$0xff]
  %v100 = vld [vmem:[%s1 + $0x230] sm:$0xff]
  %v101 = vld [vmem:[%s1 + $0x238] sm:$0xff]
  %v102 = vld [vmem:[%s1 + $0x240] sm:$0xff]
  %v103 = vld [vmem:[%s1 + $0x248] sm:$0xff]
  %v104 = vld [vmem:[%s1 + $0x250] sm:$0xff]
  %v105 = vld [vmem:[%s1 + $0x258] sm:$0xff]
  %v106 = vld [vmem:[%s1 + $0x260] sm:$0xff]
  %v107 = vld [vmem:[%s1 + $0x268] sm:$0xff]
  %v108 = vld [vmem:[%s1 + $0x270] sm:$0xff]
  %v109 = vld [vmem:[%s1 + $0x278] sm:$0xff]
  %v110 = vld [vmem:[%s1 + $0x280] sm:$0xff]
  %v111 = vld [vmem:[%s1 + $0x288] sm:$0xff]
  %v112 = vld [vmem:[%s1 + $0x290] sm:$0xff]
  %v113 = vld [vmem:[%s1 + $0x298] sm:$0xff]
  %v114 = vld [vmem:[%s1 + $0x2a0] sm:$0xff]
  %v115 = vld [vmem:[%s1 + $0x2a8] sm:$0xff]
  %v116 = vld [vmem:[%s1 + $0x2b0] sm:$0xff]
  %v117 = vld [vmem:[%s1 + $0x2b8] sm:$0xff]
  %v118 = vld [vmem:[%s1 + $0x2c0] sm:$0xff]
  %v119 = vld [vmem:[%s1 + $0x2c8] sm:$0xff]
  %v120 = vld [vmem:[%s1 + $0x2d0] sm:$0xff]
  %v121 = vld [vmem:[%s1 + $0x2d8] sm:$0xff]
  %v122 = vld [vmem:[%s1 + $0x2e0] sm:$0xff]
  %v123 = vld [vmem:[%s1 + $0x2e8] sm:$0xff]
  %v124 = vld [vmem:[%s1 + $0x2f0] sm:$0xff]
  %v125 = vld [vmem:[%s1 + $0x2f8] sm:$0xff]
  %v126 = vld [vmem:[%s1 + $0x300] sm:$0xff]
  %v127 = vld [vmem:[%s1 + $0x308] sm:$0xff]
  %v128 = vld [vmem:[%s1 + $0x310] sm:$0xff]
  %v129 = vld [vmem:[%s1 + $0x318] sm:$0xff]
  %v130 = vld [vmem:[%s1 + $0x320] sm:$0xff]
  %v131 = vld [vmem:[%s1 + $0x328] sm:$0xff]
  %v132 = vld [vmem:[%s1 + $0x330] sm:$0xff]
  %v133 = vld [vmem:[%s1 + $0x338] sm:$0xff]
  %v134 = vld [vmem:[%s1 + $0x340] sm:$0xff]
  %v135 = vld [vmem:[%s1 + $0x348] sm:$0xff]
  %v136 = vld [vmem:[%s1 + $0x350] sm:$0xff]
  %v137 = vld [vmem:[%s1 + $0x358] sm:$0xff]
  %v138 = vld [vmem:[%s1 + $0x360] sm:$0xff]
  %v139 = vld [vmem:[%s1 + $0x368] sm:$0xff]
  %v140 = vld [vmem:[%s1 + $0x370] sm:$0xff]
  %v141 = vld [vmem:[%s1 + $0x378] sm:$0xff]
  %v142 = vld [vmem:[%s1 + $0x380] sm:$0xff]
  %v143 = vld [vmem:[%s1 + $0x388] sm:$0xff]
  %v144 = vld [vmem:[%s1 + $0x390] sm:$0xff]
  %v145 = vld [vmem:[%s1 + $0x398] sm:$0xff]
  %v146 = vld [vmem:[%s1 + $0x3a0] sm:$0xff]
  %v147 = vld [vmem:[%s1 + $0x3a8] sm:$0xff]
  %v148 = vld [vmem:[%s1 + $0x3b0] sm:$0xff]
  %v149 = vld [vmem:[%s1 + $0x3b8] sm:$0xff]
  %v150 = vld [vmem:[%s1 + $0x3c0] sm:$0xff]
  %v151 = vld [vmem:[%s1 + $0x3c8] sm:$0xff]
  %v152 = vld [vmem:[%s1 + $0x3d0] sm:$0xff]
  %v153 = vld [vmem:[%s1 + $0x3d8] sm:$0xff]
  %v154 = vld [vmem:[%s1 + $0x3e0] sm:$0xff]
  %v155 = vld [vmem:[%s1 + $0x3e8] sm:$0xff]
  %v156 = vld [vmem:[%s1 + $0x3f0] sm:$0xff]
  %v157 = vld [vmem:[%s1 + $0x3f8] sm:$0xff]
  %v158 = vld [vmem:[%s1 + $0x400] sm:$0xff]
  %v159 = vld [vmem:[%s1 + $0x408] sm:$0xff]
  %v160 = vld [vmem:[%s1 + $0x410] sm:$0xff]
  %v161 = vld [vmem:[%s1 + $0x418] sm:$0xff]
  %v162 = vld [vmem:[%s1 + $0x420] sm:$0xff]
  %v163 = vld [vmem:[%s1 + $0x428] sm:$0xff]
  %v164 = vld [vmem:[%s1 + $0x430] sm:$0xff]
  %v165 = vld [vmem:[%s1 + $0x438] sm:$0xff]
  %v166 = vld [vmem:[%s1 + $0x440] sm:$0xff]
  %v167 = vld [vmem:[%s1 + $0x448] sm:$0xff]
  %v168 = vld [vmem:[%s1 + $0x450] sm:$0xff]
  %v169 = vld [vmem:[%s1 + $0x458] sm:$0xff]
  %v170 = vld [vmem:[%s1 + $0x460] sm:$0xff]
  %v171 = vld [vmem:[%s1 + $0x468] sm:$0xff]
  %v172 = vld [vmem:[%s1 + $0x470] sm:$0xff]
  %v173 = vld [vmem:[%s1 + $0x478] sm:$0xff]
  %v174 = vld [vmem:[%s1 + $0x480] sm:$0xff]
  %v175 = vld [vmem:[%s1 + $0x488] sm:$0xff]
  %v176 = vld [vmem:[%s1 + $0x490] sm:$0xff]
  %v177 = vld [vmem:[%s1 + $0x498] sm:$0xff]
  %v178 = vld [vmem:[%s1 + $0x4a0] sm:$0xff]
  %v179 = vld [vmem:[%s1 + $0x4a8] sm:$0xff]
  %v180 = vld [vmem:[%s1 + $0x4b0] sm:$0xff]
  %v181 = vld [vmem:[%s1 + $0x4b8] sm:$0xff]
  %v182 = vld [vmem:[%s1 + $0x4c0] sm:$0xff]
  %v183 = vld [vmem:[%s1 + $0x4c8] sm:$0xff]
  %v184 = vld [vmem:[%s1 + $0x4d0] sm:$0xff]
  %v185 = vld [vmem:[%s1 + $0x4d8] sm:$0xff]
  %v186 = vld [vmem:[%s1 + $0x4e0] sm:$0xff]
  %v187 = vld [vmem:[%s1 + $0x4e8] sm:$0xff]
  %v188 = vld [vmem:[%s1 + $0x4f0] sm:$0xff]
  %v189 = vld [vmem:[%s1 + $0x4f8] sm:$0xff]
  %v190 = vld [vmem:[%s2] sm:$0x1]
  %v192 = vlaneseq
  %v193 = vshrl.u32 %v192, 7
  %v194 = vsub.s32 0, %v193
  %v195 = vrot.slane %v190, %v194
  %197 = vmatprep.subr.mxu0 0.0
  %198 = vmatpush1.msra.mxu0 %v30
  %199 = vmatprep.subr.mxu0 0.0
  %200 = vmatpush1.msra.mxu0 %v31
  %201 = vmatprep.subr.mxu0 0.0
  %202 = vmatpush1.msra.mxu0 %v32
  %203 = vmatprep.subr.mxu0 0.0
  %204 = vmatpush1.msra.mxu0 %v33
  %205 = vmatprep.subr.mxu0 0.0
  %206 = vmatpush1.msra.mxu0 %v34
  %207 = vmatprep.subr.mxu0 0.0
  %208 = vmatpush1.msra.mxu0 %v35
  %209 = vmatprep.subr.mxu0 0.0
  %210 = vmatpush1.msra.mxu0 %v36
  %211 = vmatprep.subr.mxu0 0.0
  %212 = vmatpush1.msra.mxu0 %v37
  %213 = vmatprep.subr.mxu0 0.0
  %214 = vmatpush1.msra.mxu0 %v38
  %215 = vmatprep.subr.mxu0 0.0
  %216 = vmatpush1.msra.mxu0 %v39
  %217 = vmatprep.subr.mxu0 0.0
  %218 = vmatpush1.msra.mxu0 %v40
  %219 = vmatprep.subr.mxu0 0.0
  %220 = vmatpush1.msra.mxu0 %v41
  %221 = vmatprep.subr.mxu0 0.0
  %222 = vmatpush1.msra.mxu0 %v42
  %223 = vmatprep.subr.mxu0 0.0
  %224 = vmatpush1.msra.mxu0 %v43
  %225 = vmatprep.subr.mxu0 0.0
  %226 = vmatpush1.msra.mxu0 %v44
  %227 = vmatprep.subr.mxu0 0.0
  %228 = vmatpush1.msra.mxu0 %v45
  %229 = vmatprep.subr.mxu0 0.0
  %230 = vmatpush1.msra.mxu0 %v46
  %231 = vmatprep.subr.mxu0 0.0
  %232 = vmatpush1.msra.mxu0 %v47
  %233 = vmatprep.subr.mxu0 0.0
  %234 = vmatpush1.msra.mxu0 %v48
  %235 = vmatprep.subr.mxu0 0.0
  %236 = vmatpush1.msra.mxu0 %v49
  %237 = vmatprep.subr.mxu0 0.0
  %238 = vmatpush1.msra.mxu0 %v50
  %239 = vmatprep.subr.mxu0 0.0
  %240 = vmatpush1.msra.mxu0 %v51
  %241 = vmatprep.subr.mxu0 0.0
  %242 = vmatpush1.msra.mxu0 %v52
  %243 = vmatprep.subr.mxu0 0.0
  %244 = vmatpush1.msra.mxu0 %v53
  %245 = vmatprep.subr.mxu0 0.0
  %246 = vmatpush1.msra.mxu0 %v54
  %247 = vmatprep.subr.mxu0 0.0
  %248 = vmatpush1.msra.mxu0 %v55
  %249 = vmatprep.subr.mxu0 0.0
  %250 = vmatpush1.msra.mxu0 %v56
  %251 = vmatprep.subr.mxu0 0.0
  %252 = vmatpush1.msra.mxu0 %v57
  %253 = vmatprep.subr.mxu0 0.0
  %254 = vmatpush1.msra.mxu0 %v58
  %255 = vmatprep.subr.mxu0 0.0
  %256 = vmatpush1.msra.mxu0 %v59
  %257 = vmatprep.subr.mxu0 0.0
  %258 = vmatpush1.msra.mxu0 %v60
  %259 = vmatprep.subr.mxu0 0.0
  %260 = vmatpush1.msra.mxu0 %v61
  %261 = vmatprep.mubr.f32.mxu0 %v21
  %262 = vmatmul.mubr.f32.gmra.mrb[0].mxu0 %v20
  %v263 = vpop.f32.mrb[0].mxu0
  %v264 = vadd.f32 %v195, %v263
  %v265 = vpop.f32.mrb[0].mxu0
  %266 = vdwg.mxu0
  %267 = vmatprep.subr.mxu0 0.0
  %268 = vmatpush1.msra.mxu0 %v62
  %269 = vmatprep.subr.mxu0 0.0
  %270 = vmatpush1.msra.mxu0 %v63
  %271 = vmatprep.subr.mxu0 0.0
  %272 = vmatpush1.msra.mxu0 %v64
  %273 = vmatprep.subr.mxu0 0.0
  %274 = vmatpush1.msra.mxu0 %v65
  %275 = vmatprep.subr.mxu0 0.0
  %276 = vmatpush1.msra.mxu0 %v66
  %277 = vmatprep.subr.mxu0 0.0
  %278 = vmatpush1.msra.mxu0 %v67
  %279 = vmatprep.subr.mxu0 0.0
  %280 = vmatpush1.msra.mxu0 %v68
  %281 = vmatprep.subr.mxu0 0.0
  %282 = vmatpush1.msra.mxu0 %v69
  %283 = vmatprep.subr.mxu0 0.0
  %284 = vmatpush1.msra.mxu0 %v70
  %285 = vmatprep.subr.mxu0 0.0
  %286 = vmatpush1.msra.mxu0 %v71
  %287 = vmatprep.subr.mxu0 0.0
  %288 = vmatpush1.msra.mxu0 %v72
  %289 = vmatprep.subr.mxu0 0.0
  %290 = vmatpush1.msra.mxu0 %v73
  %291 = vmatprep.subr.mxu0 0.0
  %292 = vmatpush1.msra.mxu0 %v74
  %293 = vmatprep.subr.mxu0 0.0
  %294 = vmatpush1.msra.mxu0 %v75
  %295 = vmatprep.subr.mxu0 0.0
  %296 = vmatpush1.msra.mxu0 %v76
  %297 = vmatprep.subr.mxu0 0.0
  %298 = vmatpush1.msra.mxu0 %v77
  %299 = vmatprep.subr.mxu0 0.0
  %300 = vmatpush1.msra.mxu0 %v78
  %301 = vmatprep.subr.mxu0 0.0
  %302 = vmatpush1.msra.mxu0 %v79
  %303 = vmatprep.subr.mxu0 0.0
  %304 = vmatpush1.msra.mxu0 %v80
  %305 = vmatprep.subr.mxu0 0.0
  %306 = vmatpush1.msra.mxu0 %v81
  %307 = vmatprep.subr.mxu0 0.0
  %308 = vmatpush1.msra.mxu0 %v82
  %309 = vmatprep.subr.mxu0 0.0
  %310 = vmatpush1.msra.mxu0 %v83
  %311 = vmatprep.subr.mxu0 0.0
  %312 = vmatpush1.msra.mxu0 %v84
  %313 = vmatprep.subr.mxu0 0.0
  %314 = vmatpush1.msra.mxu0 %v85
  %315 = vmatprep.subr.mxu0 0.0
  %316 = vmatpush1.msra.mxu0 %v86
  %317 = vmatprep.subr.mxu0 0.0
  %318 = vmatpush1.msra.mxu0 %v87
  %319 = vmatprep.subr.mxu0 0.0
  %320 = vmatpush1.msra.mxu0 %v88
  %321 = vmatprep.subr.mxu0 0.0
  %322 = vmatpush1.msra.mxu0 %v89
  %323 = vmatprep.subr.mxu0 0.0
  %324 = vmatpush1.msra.mxu0 %v90
  %325 = vmatprep.subr.mxu0 0.0
  %326 = vmatpush1.msra.mxu0 %v91
  %327 = vmatprep.subr.mxu0 0.0
  %328 = vmatpush1.msra.mxu0 %v92
  %329 = vmatprep.subr.mxu0 0.0
  %330 = vmatpush1.msra.mxu0 %v93
  %331 = vmatprep.mubr.f32.mxu0 %v23
  %332 = vmatmul.mubr.f32.gmra.mrb[0].mxu0 %v22
  %v333 = vpop.f32.mrb[0].mxu0
  %v334 = vadd.f32 %v264, %v333
  %v335 = vpop.f32.mrb[0].mxu0
  %336 = vdwg.mxu0
  %337 = vmatprep.subr.mxu0 0.0
  %338 = vmatpush1.msra.mxu0 %v94
  %339 = vmatprep.subr.mxu0 0.0
  %340 = vmatpush1.msra.mxu0 %v95
  %341 = vmatprep.subr.mxu0 0.0
  %342 = vmatpush1.msra.mxu0 %v96
  %343 = vmatprep.subr.mxu0 0.0
  %344 = vmatpush1.msra.mxu0 %v97
  %345 = vmatprep.subr.mxu0 0.0
  %346 = vmatpush1.msra.mxu0 %v98
  %347 = vmatprep.subr.mxu0 0.0
  %348 = vmatpush1.msra.mxu0 %v99
  %349 = vmatprep.subr.mxu0 0.0
  %350 = vmatpush1.msra.mxu0 %v100
  %351 = vmatprep.subr.mxu0 0.0
  %352 = vmatpush1.msra.mxu0 %v101
  %353 = vmatprep.subr.mxu0 0.0
  %354 = vmatpush1.msra.mxu0 %v102
  %355 = vmatprep.subr.mxu0 0.0
  %356 = vmatpush1.msra.mxu0 %v103
  %357 = vmatprep.subr.mxu0 0.0
  %358 = vmatpush1.msra.mxu0 %v104
  %359 = vmatprep.subr.mxu0 0.0
  %360 = vmatpush1.msra.mxu0 %v105
  %361 = vmatprep.subr.mxu0 0.0
  %362 = vmatpush1.msra.mxu0 %v106
  %363 = vmatprep.subr.mxu0 0.0
  %364 = vmatpush1.msra.mxu0 %v107
  %365 = vmatprep.subr.mxu0 0.0
  %366 = vmatpush1.msra.mxu0 %v108
  %367 = vmatprep.subr.mxu0 0.0
  %368 = vmatpush1.msra.mxu0 %v109
  %369 = vmatprep.subr.mxu0 0.0
  %370 = vmatpush1.msra.mxu0 %v110
  %371 = vmatprep.subr.mxu0 0.0
  %372 = vmatpush1.msra.mxu0 %v111
  %373 = vmatprep.subr.mxu0 0.0
  %374 = vmatpush1.msra.mxu0 %v112
  %375 = vmatprep.subr.mxu0 0.0
  %376 = vmatpush1.msra.mxu0 %v113
  %377 = vmatprep.subr.mxu0 0.0
  %378 = vmatpush1.msra.mxu0 %v114
  %379 = vmatprep.subr.mxu0 0.0
  %380 = vmatpush1.msra.mxu0 %v115
  %381 = vmatprep.subr.mxu0 0.0
  %382 = vmatpush1.msra.mxu0 %v116
  %383 = vmatprep.subr.mxu0 0.0
  %384 = vmatpush1.msra.mxu0 %v117
  %385 = vmatprep.subr.mxu0 0.0
  %386 = vmatpush1.msra.mxu0 %v118
  %387 = vmatprep.subr.mxu0 0.0
  %388 = vmatpush1.msra.mxu0 %v119
  %389 = vmatprep.subr.mxu0 0.0
  %390 = vmatpush1.msra.mxu0 %v120
  %391 = vmatprep.subr.mxu0 0.0
  %392 = vmatpush1.msra.mxu0 %v121
  %393 = vmatprep.subr.mxu0 0.0
  %394 = vmatpush1.msra.mxu0 %v122
  %395 = vmatprep.subr.mxu0 0.0
  %396 = vmatpush1.msra.mxu0 %v123
  %397 = vmatprep.subr.mxu0 0.0
  %398 = vmatpush1.msra.mxu0 %v124
  %399 = vmatprep.subr.mxu0 0.0
  %400 = vmatpush1.msra.mxu0 %v125
  %401 = vmatprep.mubr.f32.mxu0 %v25
  %402 = vmatmul.mubr.f32.gmra.mrb[0].mxu0 %v24
  %v403 = vpop.f32.mrb[0].mxu0
  %v404 = vadd.f32 %v334, %v403
  %v405 = vpop.f32.mrb[0].mxu0
  %406 = vdwg.mxu0
  %407 = vmatprep.subr.mxu0 0.0
  %408 = vmatpush1.msra.mxu0 %v126
  %409 = vmatprep.subr.mxu0 0.0
  %410 = vmatpush1.msra.mxu0 %v127
  %411 = vmatprep.subr.mxu0 0.0
  %412 = vmatpush1.msra.mxu0 %v128
  %413 = vmatprep.subr.mxu0 0.0
  %414 = vmatpush1.msra.mxu0 %v129
  %415 = vmatprep.subr.mxu0 0.0
  %416 = vmatpush1.msra.mxu0 %v130
  %417 = vmatprep.subr.mxu0 0.0
  %418 = vmatpush1.msra.mxu0 %v131
  %419 = vmatprep.subr.mxu0 0.0
  %420 = vmatpush1.msra.mxu0 %v132
  %421 = vmatprep.subr.mxu0 0.0
  %422 = vmatpush1.msra.mxu0 %v133
  %423 = vmatprep.subr.mxu0 0.0
  %424 = vmatpush1.msra.mxu0 %v134
  %425 = vmatprep.subr.mxu0 0.0
  %426 = vmatpush1.msra.mxu0 %v135
  %427 = vmatprep.subr.mxu0 0.0
  %428 = vmatpush1.msra.mxu0 %v136
  %429 = vmatprep.subr.mxu0 0.0
  %430 = vmatpush1.msra.mxu0 %v137
  %431 = vmatprep.subr.mxu0 0.0
  %432 = vmatpush1.msra.mxu0 %v138
  %433 = vmatprep.subr.mxu0 0.0
  %434 = vmatpush1.msra.mxu0 %v139
  %435 = vmatprep.subr.mxu0 0.0
  %436 = vmatpush1.msra.mxu0 %v140
  %437 = vmatprep.subr.mxu0 0.0
  %438 = vmatpush1.msra.mxu0 %v141
  %439 = vmatprep.subr.mxu0 0.0
  %440 = vmatpush1.msra.mxu0 %v142
  %441 = vmatprep.subr.mxu0 0.0
  %442 = vmatpush1.msra.mxu0 %v143
  %443 = vmatprep.subr.mxu0 0.0
  %444 = vmatpush1.msra.mxu0 %v144
  %445 = vmatprep.subr.mxu0 0.0
  %446 = vmatpush1.msra.mxu0 %v145
  %447 = vmatprep.subr.mxu0 0.0
  %448 = vmatpush1.msra.mxu0 %v146
  %449 = vmatprep.subr.mxu0 0.0
  %450 = vmatpush1.msra.mxu0 %v147
  %451 = vmatprep.subr.mxu0 0.0
  %452 = vmatpush1.msra.mxu0 %v148
  %453 = vmatprep.subr.mxu0 0.0
  %454 = vmatpush1.msra.mxu0 %v149
  %455 = vmatprep.subr.mxu0 0.0
  %456 = vmatpush1.msra.mxu0 %v150
  %457 = vmatprep.subr.mxu0 0.0
  %458 = vmatpush1.msra.mxu0 %v151
  %459 = vmatprep.subr.mxu0 0.0
  %460 = vmatpush1.msra.mxu0 %v152
  %461 = vmatprep.subr.mxu0 0.0
  %462 = vmatpush1.msra.mxu0 %v153
  %463 = vmatprep.subr.mxu0 0.0
  %464 = vmatpush1.msra.mxu0 %v154
  %465 = vmatprep.subr.mxu0 0.0
  %466 = vmatpush1.msra.mxu0 %v155
  %467 = vmatprep.subr.mxu0 0.0
  %468 = vmatpush1.msra.mxu0 %v156
  %469 = vmatprep.subr.mxu0 0.0
  %470 = vmatpush1.msra.mxu0 %v157
  %471 = vmatprep.mubr.f32.mxu0 %v27
  %472 = vmatmul.mubr.f32.gmra.mrb[0].mxu0 %v26
  %v473 = vpop.f32.mrb[0].mxu0
  %v474 = vadd.f32 %v404, %v473
  %v475 = vpop.f32.mrb[0].mxu0
  %476 = vdwg.mxu0
  %477 = vmatprep.subr.mxu0 0.0
  %478 = vmatpush1.msra.mxu0 %v158
  %479 = vmatprep.subr.mxu0 0.0
  %480 = vmatpush1.msra.mxu0 %v159
  %481 = vmatprep.subr.mxu0 0.0
  %482 = vmatpush1.msra.mxu0 %v160
  %483 = vmatprep.subr.mxu0 0.0
  %484 = vmatpush1.msra.mxu0 %v161
  %485 = vmatprep.subr.mxu0 0.0
  %486 = vmatpush1.msra.mxu0 %v162
  %487 = vmatprep.subr.mxu0 0.0
  %488 = vmatpush1.msra.mxu0 %v163
  %489 = vmatprep.subr.mxu0 0.0
  %490 = vmatpush1.msra.mxu0 %v164
  %491 = vmatprep.subr.mxu0 0.0
  %492 = vmatpush1.msra.mxu0 %v165
  %493 = vmatprep.subr.mxu0 0.0
  %494 = vmatpush1.msra.mxu0 %v166
  %495 = vmatprep.subr.mxu0 0.0
  %496 = vmatpush1.msra.mxu0 %v167
  %497 = vmatprep.subr.mxu0 0.0
  %498 = vmatpush1.msra.mxu0 %v168
  %499 = vmatprep.subr.mxu0 0.0
  %500 = vmatpush1.msra.mxu0 %v169
  %501 = vmatprep.subr.mxu0 0.0
  %502 = vmatpush1.msra.mxu0 %v170
  %503 = vmatprep.subr.mxu0 0.0
  %504 = vmatpush1.msra.mxu0 %v171
  %505 = vmatprep.subr.mxu0 0.0
  %506 = vmatpush1.msra.mxu0 %v172
  %507 = vmatprep.subr.mxu0 0.0
  %508 = vmatpush1.msra.mxu0 %v173
  %509 = vmatprep.subr.mxu0 0.0
  %510 = vmatpush1.msra.mxu0 %v174
  %511 = vmatprep.subr.mxu0 0.0
  %512 = vmatpush1.msra.mxu0 %v175
  %513 = vmatprep.subr.mxu0 0.0
  %514 = vmatpush1.msra.mxu0 %v176
  %515 = vmatprep.subr.mxu0 0.0
  %516 = vmatpush1.msra.mxu0 %v177
  %517 = vmatprep.subr.mxu0 0.0
  %518 = vmatpush1.msra.mxu0 %v178
  %519 = vmatprep.subr.mxu0 0.0
  %520 = vmatpush1.msra.mxu0 %v179
  %521 = vmatprep.subr.mxu0 0.0
  %522 = vmatpush1.msra.mxu0 %v180
  %523 = vmatprep.subr.mxu0 0.0
  %524 = vmatpush1.msra.mxu0 %v181
  %525 = vmatprep.subr.mxu0 0.0
  %526 = vmatpush1.msra.mxu0 %v182
  %527 = vmatprep.subr.mxu0 0.0
  %528 = vmatpush1.msra.mxu0 %v183
  %529 = vmatprep.subr.mxu0 0.0
  %530 = vmatpush1.msra.mxu0 %v184
  %531 = vmatprep.subr.mxu0 0.0
  %532 = vmatpush1.msra.mxu0 %v185
  %533 = vmatprep.subr.mxu0 0.0
  %534 = vmatpush1.msra.mxu0 %v186
  %535 = vmatprep.subr.mxu0 0.0
  %536 = vmatpush1.msra.mxu0 %v187
  %537 = vmatprep.subr.mxu0 0.0
  %538 = vmatpush1.msra.mxu0 %v188
  %539 = vmatprep.subr.mxu0 0.0
  %540 = vmatpush1.msra.mxu0 %v189
  %541 = vmatprep.mubr.f32.mxu0 %v29
  %542 = vmatmul.mubr.f32.gmra.mrb[0].mxu0 %v28
  %v543 = vpop.f32.mrb[0].mxu0
  %v544 = vadd.f32 %v474, %v543
  %v545 = vpop.f32.mrb[0].mxu0
  %546 = vdwg.mxu0
  %v547 = vld [vmem:[%s3] sm:$0xff]
  %v548 = vld [vmem:[%s3 + $0x8] sm:$0xff]
  %v549 = vld [vmem:[%s3 + $0x10] sm:$0xff]
  %v550 = vld [vmem:[%s3 + $0x18] sm:$0xff]
  %v551 = vld [vmem:[%s4] sm:$0x1]
  %v553 = vlaneseq
  %v554 = vshrl.u32 %v553, 7
  %v555 = vsub.s32 0, %v554
  %v556 = vrot.slane %v551, %v555
  %vm558 = vcmask 261120
  %v560 = vsel %vm558, %v544, 0
  %562 = vmatprep.subr.mxu0 0.0
  %563 = vmatpush1.msra.mxu0 %v547
  %564 = vmatprep.subr.mxu0 0.0
  %565 = vmatpush1.msra.mxu0 %v548
  %566 = vmatprep.subr.mxu0 0.0
  %567 = vmatpush1.msra.mxu0 %v549
  %568 = vmatprep.subr.mxu0 0.0
  %569 = vmatpush1.msra.mxu0 %v550
  %570 = vmatprep.subr.mxu0 0.0
  %571 = vmatpush1.msra.mxu0 0.0
  %572 = vmatprep.subr.mxu0 0.0
  %573 = vmatpush1.msra.mxu0 0.0
  %574 = vmatprep.subr.mxu0 0.0
  %575 = vmatpush1.msra.mxu0 0.0
  %576 = vmatprep.subr.mxu0 0.0
  %577 = vmatpush1.msra.mxu0 0.0
  %578 = vmatprep.subr.mxu0 0.0
  %579 = vmatpush1.msra.mxu0 0.0
  %580 = vmatprep.subr.mxu0 0.0
  %581 = vmatpush1.msra.mxu0 0.0
  %582 = vmatprep.subr.mxu0 0.0
  %583 = vmatpush1.msra.mxu0 0.0
  %584 = vmatprep.subr.mxu0 0.0
  %585 = vmatpush1.msra.mxu0 0.0
  %586 = vmatprep.subr.mxu0 0.0
  %587 = vmatpush1.msra.mxu0 0.0
  %588 = vmatprep.subr.mxu0 0.0
  %589 = vmatpush1.msra.mxu0 0.0
  %590 = vmatprep.subr.mxu0 0.0
  %591 = vmatpush1.msra.mxu0 0.0
  %592 = vmatprep.subr.mxu0 0.0
  %593 = vmatpush1.msra.mxu0 0.0
  %594 = vmatprep.subr.mxu0 0.0
  %595 = vmatpush1.msra.mxu0 0.0
  %596 = vmatprep.subr.mxu0 0.0
  %597 = vmatpush1.msra.mxu0 0.0
  %598 = vmatprep.subr.mxu0 0.0
  %599 = vmatpush1.msra.mxu0 0.0
  %600 = vmatprep.subr.mxu0 0.0
  %601 = vmatpush1.msra.mxu0 0.0
  %602 = vmatprep.subr.mxu0 0.0
  %603 = vmatpush1.msra.mxu0 0.0
  %604 = vmatprep.subr.mxu0 0.0
  %605 = vmatpush1.msra.mxu0 0.0
  %606 = vmatprep.subr.mxu0 0.0
  %607 = vmatpush1.msra.mxu0 0.0
  %608 = vmatprep.subr.mxu0 0.0
  %609 = vmatpush1.msra.mxu0 0.0
  %610 = vmatprep.subr.mxu0 0.0
  %611 = vmatpush1.msra.mxu0 0.0
  %612 = vmatprep.subr.mxu0 0.0
  %613 = vmatpush1.msra.mxu0 0.0
  %614 = vmatprep.subr.mxu0 0.0
  %615 = vmatpush1.msra.mxu0 0.0
  %616 = vmatprep.subr.mxu0 0.0
  %617 = vmatpush1.msra.mxu0 0.0
  %618 = vmatprep.subr.mxu0 0.0
  %619 = vmatpush1.msra.mxu0 0.0
  %620 = vmatprep.subr.mxu0 0.0
  %621 = vmatpush1.msra.mxu0 0.0
  %622 = vmatprep.subr.mxu0 0.0
  %623 = vmatpush1.msra.mxu0 0.0
  %624 = vmatprep.subr.mxu0 0.0
  %625 = vmatpush1.msra.mxu0 0.0
  %626 = vmatprep.mubr.f32.mxu0 0.0
  %627 = vmatmul.mubr.f32.gmra.mrb[0].mxu0 %v560
  %v628 = vpop.f32.mrb[0].mxu0
  %v629 = vadd.f32 %v556, %v628
  %v630 = vpop.f32.mrb[0].mxu0
  %631 = vdwg.mxu0
  %v632 = vmul.f32 %v629, 0.5
  %v633 = vmul.f32 %v629, %v629
  %v634 = vmul.f32 %v633, %v629
  %v635 = vmul.f32 %v634, 0.044715
  %v636 = vadd.f32 %v629, %v635
  %v637 = vmul.f32 %v636, 0.7978846
  %v638 = vtanh.pop %v637
  %v639 = vadd.f32 %v638, 1.0
  %v640 = vmul.f32 %v632, %v639
  %vm641 = vcmask 15360
  %642 = vst.msk [vmem:[%s5] sm:$0xff] %vm641, %v640
  // Predicated region
  $region22: #{model_forward.1} parent=0 // pred_check
    _
  $region23: #{model_forward.1} parent=0 // pred_check_branch
    %644 = sbr.rel (0) target = $region25
  $region24: #{model_forward.1} parent=0 // pred_region
    _
  $region25: #{model_forward.1} parent=0 // pred_fallthru
    _
  // Predicated region
  $region26: #{model_forward.1} parent=0 // pred_check
    _
  $region27: #{model_forward.1} parent=0 // pred_check_branch
    %646 = sbr.rel (0) target = $region29
  $region28: #{model_forward.1} parent=0 // pred_region
    _
  $region29: #{model_forward.1} parent=0 // pred_fallthru
    _

</llo_original>
